<compile_context>
chip_gen: v6e
topology: v6e:2x2x1
jax: 0.10.0
libtpu: 0.0.40
codegen_flags: <defaults>
</compile_context>

<pallas_src>
import jax
import jax.numpy as jnp
from jax.experimental import pallas as pl
from jax.experimental.pallas import tpu as pltpu


def time_encoding_kernel(t_ref, freqs_ref, phase_ref, w1_ref, b1_ref,
                         w2_ref, b2_ref, out_ref):
    # t_ref:     (Bp, 1)        f32   (resident across grid steps)
    # freqs_ref: (1, dim//4)    f32   [freqs, freqs]          (resident)
    # phase_ref: (1, dim//4)    f32   [pi/2 .. pi/2, 0 .. 0]  (resident)
    # w1_ref:    (dim//4, dim)  bf16                          (resident)
    # b1_ref:    (1, dim)       f32                           (resident)
    # w2_ref:    (dim, tn)      bf16  column tile of W2       (streamed)
    # b2_ref:    (1, tn)        f32   column tile of b2       (streamed)
    # out_ref:   (Bp, tn)       f32   column tile of output
    t = t_ref[...]                                            # (Bp, 1)

    # Fused sinusoidal encoding: cos(x) = sin(x + pi/2)  ->  one K=dim//4 dot.
    enc = jnp.sin(t * freqs_ref[...] + phase_ref[...]).astype(jnp.bfloat16)

    # linear1 (bf16 MXU, f32 accumulation) + SiLU in f32
    h = (jnp.dot(enc, w1_ref[...], preferred_element_type=jnp.float32)
         + b1_ref[...])
    h = h * jax.nn.sigmoid(h)

    # linear2 column tile (bf16 MXU, f32 accumulation)
    out = (jnp.dot(h.astype(jnp.bfloat16), w2_ref[...],
                   preferred_element_type=jnp.float32)
           + b2_ref[...])
    out_ref[...] = out.astype(out_ref.dtype)


def prepare_params(freqs, w1, b1, w2, b2):
    """One-time conversion to kernel-ready dtypes/layout.  Call ONCE at init,
    NOT inside the per-step forward (that would re-materialize bf16 copies
    from the f32 weights on every call)."""
    d8 = freqs.shape[0]
    dim = w2.shape[0]
    freqs_full = jnp.concatenate([freqs, freqs]).astype(jnp.float32)
    phase = jnp.concatenate([jnp.full((d8,), jnp.pi / 2, jnp.float32),
                             jnp.zeros((d8,), jnp.float32)])
    return dict(
        freqs_full=freqs_full.reshape(1, 2 * d8),
        phase=phase.reshape(1, 2 * d8),
        w1=w1.astype(jnp.bfloat16),
        b1=b1.astype(jnp.float32).reshape(1, dim),
        w2=w2.astype(jnp.bfloat16),
        b2=b2.astype(jnp.float32).reshape(1, dim),
    )


def time_encoding_forward(t, params):
    """t: (B,) int/float timesteps. params: output of prepare_params.
    Returns (B, dim) f32."""
    freqs_full = params["freqs_full"]
    phase = params["phase"]
    w1, b1 = params["w1"], params["b1"]
    w2, b2 = params["w2"], params["b2"]

    B = t.shape[0]
    d4 = w1.shape[0]
    dim = w2.shape[0]

    # Pad batch to a multiple of 8 (full sublane tiles); padded rows use t=0.
    Bp = ((B + 7) // 8) * 8
    t2d = jnp.zeros((Bp, 1), jnp.float32).at[:B, 0].set(t.astype(jnp.float32))

    # Column-split the dominant W2 DMA across grid steps (2 tiles -> one per
    # v7x TensorCore); require lane-aligned (multiple-of-128) column tiles.
    n_split = 2 if dim % 256 == 0 else 1
    tn = dim // n_split

    # Advisory cost so XLA can overlap this DMA-bound call with neighbors.
    cost = pl.CostEstimate(
        flops=2 * Bp * d4 * dim + 2 * Bp * dim * dim,
        transcendentals=Bp * d4 + Bp * dim,
        bytes_accessed=(t2d.size * 4 + freqs_full.size * 4 + phase.size * 4
                        + w1.size * 2 + b1.size * 4
                        + w2.size * 2 + b2.size * 4
                        + Bp * dim * 4),
    )

    out = pl.pallas_call(
        time_encoding_kernel,
        out_shape=jax.ShapeDtypeStruct((Bp, dim), jnp.float32),
        grid=(n_split,),
        in_specs=[
            pl.BlockSpec((Bp, 1),   lambda j: (0, 0)),   # t        (resident)
            pl.BlockSpec((1, d4),   lambda j: (0, 0)),   # freqs    (resident)
            pl.BlockSpec((1, d4),   lambda j: (0, 0)),   # phase    (resident)
            pl.BlockSpec((d4, dim), lambda j: (0, 0)),   # W1       (resident)
            pl.BlockSpec((1, dim),  lambda j: (0, 0)),   # b1       (resident)
            pl.BlockSpec((dim, tn), lambda j: (0, j)),   # W2 cols  (streamed)
            pl.BlockSpec((1, tn),   lambda j: (0, j)),   # b2 cols  (streamed)
        ],
        out_specs=pl.BlockSpec((Bp, tn), lambda j: (0, j)),
        compiler_params=pltpu.CompilerParams(
            dimension_semantics=("parallel",)),
        cost_estimate=cost,
    )(t2d, freqs_full, phase, w1, b1, w2, b2)
    return out[:B]


def init_params(key, dim):
    """Deterministic init mimicking nn.Linear (uniform +-1/sqrt(fan_in)).
    Weights stored transposed: (in_features, out_features)."""
    d4 = dim // 4
    k1, k2, k3, k4 = jax.random.split(key, 4)
    bound1 = 1.0 / jnp.sqrt(d4)
    bound2 = 1.0 / jnp.sqrt(dim)
    w1 = jax.random.uniform(k1, (d4, dim), jnp.float32, -bound1, bound1)
    b1 = jax.random.uniform(k2, (dim,), jnp.float32, -bound1, bound1)
    w2 = jax.random.uniform(k3, (dim, dim), jnp.float32, -bound2, bound2)
    b2 = jax.random.uniform(k4, (dim,), jnp.float32, -bound2, bound2)
    d8 = dim // 8
    freqs = jnp.power(10000.0, -jnp.arange(d8, dtype=jnp.float32) / d8)
    return freqs, w1, b1, w2, b2


def reference_forward_f32(t, freqs, w1, b1, w2, b2):
    """Pure f32 reference (matches the PyTorch module's math exactly)."""
    t = t.astype(jnp.float32)[:, None]
    x = t * freqs[None, :]
    enc = jnp.concatenate([jnp.cos(x), jnp.sin(x)], axis=-1)
    h = enc @ w1 + b1
    h = h * jax.nn.sigmoid(h)
    return h @ w2 + b2


def reference_forward_mixed(t, params):
    """Mirrors the kernel's fused-phase / bf16-f32 arithmetic exactly."""
    t = t.astype(jnp.float32)[:, None]
    enc = jnp.sin(t * params["freqs_full"] + params["phase"]).astype(jnp.bfloat16)
    h = (jnp.dot(enc, params["w1"], preferred_element_type=jnp.float32)
         + params["b1"])
    h = h * jax.nn.sigmoid(h)
    return (jnp.dot(h.astype(jnp.bfloat16), params["w2"],
                    preferred_element_type=jnp.float32)
            + params["b2"])


if __name__ == "__main__":
    dim = 256          # must be divisible by 8 (small analogue of default 1280)
    batch = 2

    key = jax.random.PRNGKey(0)
    kp, kt = jax.random.split(key)
    freqs, w1, b1, w2, b2 = init_params(kp, dim)

    # One-time param preparation (bf16 weights, fused freq/phase constants).
    params = prepare_params(freqs, w1, b1, w2, b2)
    params = jax.tree_util.tree_map(jax.block_until_ready, params)

    t = jax.random.randint(kt, (batch,), 0, 1000)   # non-negative int timesteps

    fwd = jax.jit(time_encoding_forward)
    out = jax.block_until_ready(fwd(t, params))
    assert out.shape == (batch, dim)

    # Tight check against a reference mirroring the kernel's exact mixed math.
    ref_mixed = reference_forward_mixed(t, params)
    assert jnp.allclose(out, ref_mixed, atol=1e-3, rtol=1e-3)

    # Loose check against the full-f32 PyTorch-equivalent reference
    # (bf16 weight quantization introduces ~1e-2-scale absolute differences).
    ref_f32 = reference_forward_f32(t, freqs, w1, b1, w2, b2)
    assert jnp.allclose(out, ref_f32, atol=5e-2, rtol=5e-2)

    print("KERNEL_OK")
</pallas_src>

<mosaic_0001>
module attributes {stable_mosaic.version = 11 : i64} {
  func.func @time_encoding_kernel(%arg0: i32, %arg1: memref<8x1xf32, #tpu.memory_space<vmem>>, %arg2: memref<1x64xf32, #tpu.memory_space<vmem>>, %arg3: memref<1x64xf32, #tpu.memory_space<vmem>>, %arg4: memref<64x256xbf16, #tpu.memory_space<vmem>>, %arg5: memref<1x256xf32, #tpu.memory_space<vmem>>, %arg6: memref<256x128xbf16, #tpu.memory_space<vmem>>, %arg7: memref<1x128xf32, #tpu.memory_space<vmem>>, %arg8: memref<8x128xf32, #tpu.memory_space<vmem>>) attributes {dimension_semantics = [#tpu.dimension_semantics<parallel>], iteration_bounds = array<i64: 2>, scalar_prefetch = 0 : i64, scratch_operands = 0 : i64, tpu.core_type = #tpu.core_type<tc>, window_params = [{pipeline_mode = #tpu.pipeline_mode<synchronous>, transform_indices = @transform_0, window_bounds = array<i64: 8, 1>}, {pipeline_mode = #tpu.pipeline_mode<synchronous>, transform_indices = @transform_1, window_bounds = array<i64: 1, 64>}, {pipeline_mode = #tpu.pipeline_mode<synchronous>, transform_indices = @transform_2, window_bounds = array<i64: 1, 64>}, {pipeline_mode = #tpu.pipeline_mode<synchronous>, transform_indices = @transform_3, window_bounds = array<i64: 64, 256>}, {pipeline_mode = #tpu.pipeline_mode<synchronous>, transform_indices = @transform_4, window_bounds = array<i64: 1, 256>}, {transform_indices = @transform_5, window_bounds = array<i64: 256, 128>}, {transform_indices = @transform_6, window_bounds = array<i64: 1, 128>}, {transform_indices = @transform_7, window_bounds = array<i64: 8, 128>}]} {
    %c0 = arith.constant 0 : index
    %c0_0 = arith.constant 0 : index
    %0 = vector.load %arg1[%c0, %c0_0] : memref<8x1xf32, #tpu.memory_space<vmem>>, vector<8x1xf32>
    %c0_1 = arith.constant 0 : index
    %c0_2 = arith.constant 0 : index
    %1 = vector.load %arg2[%c0_1, %c0_2] : memref<1x64xf32, #tpu.memory_space<vmem>>, vector<1x64xf32>
    %2 = vector.broadcast %0 : vector<8x1xf32> to vector<8x64xf32>
    %3 = vector.broadcast %1 : vector<1x64xf32> to vector<8x64xf32>
    %4 = arith.mulf %2, %3 : vector<8x64xf32>
    %c0_3 = arith.constant 0 : index
    %c0_4 = arith.constant 0 : index
    %5 = vector.load %arg3[%c0_3, %c0_4] : memref<1x64xf32, #tpu.memory_space<vmem>>, vector<1x64xf32>
    %6 = vector.broadcast %5 : vector<1x64xf32> to vector<8x64xf32>
    %7 = arith.addf %4, %6 : vector<8x64xf32>
    %8 = math.sin %7 : vector<8x64xf32>
    %9 = arith.truncf %8 : vector<8x64xf32> to vector<8x64xbf16>
    %c0_5 = arith.constant 0 : index
    %c0_6 = arith.constant 0 : index
    %10 = vector.load %arg4[%c0_5, %c0_6] : memref<64x256xbf16, #tpu.memory_space<vmem>>, vector<64x256xbf16>
    %cst = arith.constant dense<0.000000e+00> : vector<8x256xf32>
    %11 = tpu.matmul %9, %10, %cst {dimension_numbers = #tpu.dot_dimension_numbers<[1], [0], [0], [1], [0, 0, 1, 1], [], []>} : vector<8x64xbf16>, vector<64x256xbf16>, vector<8x256xf32> -> vector<8x256xf32>
    %c0_7 = arith.constant 0 : index
    %c0_8 = arith.constant 0 : index
    %12 = vector.load %arg5[%c0_7, %c0_8] : memref<1x256xf32, #tpu.memory_space<vmem>>, vector<1x256xf32>
    %13 = vector.broadcast %12 : vector<1x256xf32> to vector<8x256xf32>
    %14 = arith.addf %11, %13 : vector<8x256xf32>
    %15 = arith.negf %14 : vector<8x256xf32>
    %16 = math.exp %15 : vector<8x256xf32>
    %cst_9 = arith.constant 1.000000e+00 : f32
    %17 = vector.broadcast %cst_9 : f32 to vector<8x256xf32>
    %18 = arith.addf %17, %16 : vector<8x256xf32>
    %19 = arith.divf %17, %18 : vector<8x256xf32>
    %20 = arith.mulf %14, %19 : vector<8x256xf32>
    %21 = arith.truncf %20 : vector<8x256xf32> to vector<8x256xbf16>
    %c0_10 = arith.constant 0 : index
    %c0_11 = arith.constant 0 : index
    %22 = vector.load %arg6[%c0_10, %c0_11] : memref<256x128xbf16, #tpu.memory_space<vmem>>, vector<256x128xbf16>
    %cst_12 = arith.constant dense<0.000000e+00> : vector<8x128xf32>
    %23 = tpu.matmul %21, %22, %cst_12 {dimension_numbers = #tpu.dot_dimension_numbers<[1], [0], [0], [1], [0, 0, 1, 1], [], []>} : vector<8x256xbf16>, vector<256x128xbf16>, vector<8x128xf32> -> vector<8x128xf32>
    %c0_13 = arith.constant 0 : index
    %c0_14 = arith.constant 0 : index
    %24 = vector.load %arg7[%c0_13, %c0_14] : memref<1x128xf32, #tpu.memory_space<vmem>>, vector<1x128xf32>
    %25 = vector.broadcast %24 : vector<1x128xf32> to vector<8x128xf32>
    %26 = arith.addf %23, %25 : vector<8x128xf32>
    %c0_15 = arith.constant 0 : index
    %c0_16 = arith.constant 0 : index
    %27 = vector.load %arg8[%c0_15, %c0_16] : memref<8x128xf32, #tpu.memory_space<vmem>>, vector<8x128xf32>
    tpu.vector_store %arg8[%c0_15, %c0_16], %26 {strides = array<i32>} : memref<8x128xf32, #tpu.memory_space<vmem>>, vector<8x128xf32>,
    return
  }
  func.func @transform_0(%arg0: i32) -> (i32, i32) {
    %c0_i32 = arith.constant 0 : i32
    %c0_i32_0 = arith.constant 0 : i32
    %c0_i32_1 = arith.constant 0 : i32
    return %c0_i32, %c0_i32_0 : i32, i32
  }
  func.func @transform_1(%arg0: i32) -> (i32, i32) {
    %c0_i32 = arith.constant 0 : i32
    %c0_i32_0 = arith.constant 0 : i32
    %c0_i32_1 = arith.constant 0 : i32
    return %c0_i32, %c0_i32_0 : i32, i32
  }
  func.func @transform_2(%arg0: i32) -> (i32, i32) {
    %c0_i32 = arith.constant 0 : i32
    %c0_i32_0 = arith.constant 0 : i32
    %c0_i32_1 = arith.constant 0 : i32
    return %c0_i32, %c0_i32_0 : i32, i32
  }
  func.func @transform_3(%arg0: i32) -> (i32, i32) {
    %c0_i32 = arith.constant 0 : i32
    %c0_i32_0 = arith.constant 0 : i32
    %c0_i32_1 = arith.constant 0 : i32
    return %c0_i32, %c0_i32_0 : i32, i32
  }
  func.func @transform_4(%arg0: i32) -> (i32, i32) {
    %c0_i32 = arith.constant 0 : i32
    %c0_i32_0 = arith.constant 0 : i32
    %c0_i32_1 = arith.constant 0 : i32
    return %c0_i32, %c0_i32_0 : i32, i32
  }
  func.func @transform_5(%arg0: i32) -> (i32, i32) {
    %c0_i32 = arith.constant 0 : i32
    %c0_i32_0 = arith.constant 0 : i32
    return %c0_i32, %arg0 : i32, i32
  }
  func.func @transform_6(%arg0: i32) -> (i32, i32) {
    %c0_i32 = arith.constant 0 : i32
    %c0_i32_0 = arith.constant 0 : i32
    return %c0_i32, %arg0 : i32, i32
  }
  func.func @transform_7(%arg0: i32) -> (i32, i32) {
    %c0_i32 = arith.constant 0 : i32
    %c0_i32_0 = arith.constant 0 : i32
    return %c0_i32, %arg0 : i32, i32
  }
}

</mosaic_0001>

<llo_original>
// kernel: time_encoding_forward.1
$region0: #{time_encoding_forward.1}
  #allocation0 [shape = 'u32[]', space=smem, size = 0x4, offset = 0x4, fixed_abs, tag = 'smem constant byte address 0x4 - core index']
  #allocation1 [shape = 'u32[144,128]{1,0:T(1,128)}', space=vmem, size = 0x12000, scoped, tag = 'internal scratch']
  %s0 = inlined_call_operand.vmem [shape: f32[8,1], index: 0, kind: input, shape index: {}]
  %s1 = inlined_call_operand.vmem [shape: f32[1,64], index: 1, kind: input, shape index: {}]
  %s2 = inlined_call_operand.vmem [shape: f32[1,64], index: 2, kind: input, shape index: {}]
  %s3 = inlined_call_operand.hbm [shape: bf16[64,256], index: 3, kind: input, shape index: {}]
  %s4 = inlined_call_operand.vmem [shape: f32[1,256], index: 4, kind: input, shape index: {}]
  %s5 = inlined_call_operand.hbm [shape: bf16[256,256], index: 5, kind: input, shape index: {}]
  %s6 = inlined_call_operand.vmem [shape: f32[1,256], index: 6, kind: input, shape index: {}]
  %s7 = inlined_call_operand.vmem [shape: f32[8,256], index: 7, kind: output, shape index: {}]
  %s8 = sld [smem:[#allocation0]]
  $region69: #{time_encoding_forward.1} parent=0
    _
  %s10 = ssub.s32 1, %s8
  %s11 = scalar_select 0, %s10, %s8
  $region1: #{time_encoding_forward.1} parent=0
    #allocation2 [shape = 'u8[32768]{0}', space=vmem, size = 0x8000, scoped, tag = 'input window, operand 3, single buffered']
    #allocation3 [shape = 's32[2]{0}', space=sflag, size = 0x8, scoped, tag = 'scoped memory for time_encoding_forward.1']
    #allocation4 [shape = 'u8[131072]{0}', space=vmem, size = 0x20000, scoped, tag = 'input window, operand 5']
    #allocation5 [shape = 's32[2]{0}', space=sflag, size = 0x8, scoped, tag = 'scoped memory for time_encoding_forward.1']
    %12 = vsyncpa [#allocation3], 0
    %13 = vsyncpa [#allocation5], 0
    %s14 = scalar_lea.sflag [#allocation5], 1
    %15 = vsyncpa %s14, 0
    loop: start=0, step=1, limit=4
    $region2: #{time_encoding_forward.1} parent=1 // loop_pre_header
      _
    $region3: #{time_encoding_forward.1} parent=1 // loop_header
      %s17 = sphi 0, %s21
      %p18 = scmp.ge.s32.totalorder %s17, 4
      %s25 = sphi 0, %s25
      %s27 = sphi 0, %s25
      %s28 = sphi 0, %s27
      %s42 = sphi 0, %s28
      %s46 = sphi 0, %s46
      %s48 = sphi 0, %s46
      %s49 = sphi 0, %s48
      %s63 = sphi 0, %s49
      %s67 = sphi 0, %s67
      %s69 = sphi 0, %s67
      %s70 = sphi 0, %s69
      %s84 = sphi 0, %s70
      %s88 = sphi 0, %s88
      %s90 = sphi 0, %s88
      %s91 = sphi 0, %s90
      %s105 = sphi 0, %s91
      %s109 = sphi 0, %s109
      %s111 = sphi 0, %s109
      %s112 = sphi 0, %s111
      %s126 = sphi 0, %s112
      %s132 = sphi 0, %s134
      %s135 = sphi 0, %s132
      %s136 = sphi 0, %s135
      %s152 = sphi 0, %s136
      %s158 = sphi 0, %s160
      %s161 = sphi 0, %s158
      %s162 = sphi 0, %s161
      %s178 = sphi 0, %s162
      %s184 = sphi 0, %s186
      %s187 = sphi 0, %s184
      %s188 = sphi 0, %s187
      %s204 = sphi 0, %s188
    $region4: #{time_encoding_forward.1} parent=1 // loop_header_branch
      %20 = sbr.rel (%p18) target = $region8
    $region5: #{time_encoding_forward.1} parent=1 // loop_body
      %s22 = ssub.s32 %s17, 1
      %s23 = ssub.s32 %s17, 2
      %s24 = sadd.s32 %s17, 1
      %s26 = sadd.s32 %s25, 1
      %p29 = scmp.eq.s32.totalorder %s17, 1
      %p30 = scmp.ne.s32.totalorder %s25, %s27
      %p31 = scmp.eq.s32.totalorder %s17, 0
      %p32 = por %p30, %p31
      %p33 = scmp.ne.s32.totalorder %s25, %s27
      %p34 = scmp.eq.s32.totalorder %s22, 1
      %p35 = por %p33, %p34
      %p36 = scmp.ne.s32.totalorder %s27, %s28
      %p37 = scmp.eq.s32.totalorder %s22, 0
      %p38 = por %p36, %p37
      %p39 = scmp.ne.s32.totalorder %s27, %s28
      %p40 = scmp.eq.s32.totalorder %s23, 1
      %p41 = por %p39, %p40
      %p43 = scmp.ne.s32.totalorder %s28, %s42
      %p44 = scmp.eq.s32.totalorder %s23, 0
      %p45 = por %p43, %p44
      %s47 = sadd.s32 %s46, 1
      %p50 = scmp.eq.s32.totalorder %s17, 1
      %p51 = scmp.ne.s32.totalorder %s46, %s48
      %p52 = scmp.eq.s32.totalorder %s17, 0
      %p53 = por %p51, %p52
      %p54 = scmp.ne.s32.totalorder %s46, %s48
      %p55 = scmp.eq.s32.totalorder %s22, 1
      %p56 = por %p54, %p55
      %p57 = scmp.ne.s32.totalorder %s48, %s49
      %p58 = scmp.eq.s32.totalorder %s22, 0
      %p59 = por %p57, %p58
      %p60 = scmp.ne.s32.totalorder %s48, %s49
      %p61 = scmp.eq.s32.totalorder %s23, 1
      %p62 = por %p60, %p61
      %p64 = scmp.ne.s32.totalorder %s49, %s63
      %p65 = scmp.eq.s32.totalorder %s23, 0
      %p66 = por %p64, %p65
      %s68 = sadd.s32 %s67, 1
      %p71 = scmp.eq.s32.totalorder %s17, 1
      %p72 = scmp.ne.s32.totalorder %s67, %s69
      %p73 = scmp.eq.s32.totalorder %s17, 0
      %p74 = por %p72, %p73
      %p75 = scmp.ne.s32.totalorder %s67, %s69
      %p76 = scmp.eq.s32.totalorder %s22, 1
      %p77 = por %p75, %p76
      %p78 = scmp.ne.s32.totalorder %s69, %s70
      %p79 = scmp.eq.s32.totalorder %s22, 0
      %p80 = por %p78, %p79
      %p81 = scmp.ne.s32.totalorder %s69, %s70
      %p82 = scmp.eq.s32.totalorder %s23, 1
      %p83 = por %p81, %p82
      %p85 = scmp.ne.s32.totalorder %s70, %s84
      %p86 = scmp.eq.s32.totalorder %s23, 0
      %p87 = por %p85, %p86
      %s89 = sadd.s32 %s88, 1
      %p92 = scmp.eq.s32.totalorder %s17, 1
      %p93 = scmp.ne.s32.totalorder %s88, %s90
      %p94 = scmp.eq.s32.totalorder %s17, 0
      %p95 = por %p93, %p94
      %p96 = scmp.ne.s32.totalorder %s88, %s90
      %p97 = scmp.eq.s32.totalorder %s22, 1
      %p98 = por %p96, %p97
      %p99 = scmp.ne.s32.totalorder %s90, %s91
      %p100 = scmp.eq.s32.totalorder %s22, 0
      %p101 = por %p99, %p100
      %p102 = scmp.ne.s32.totalorder %s90, %s91
      %p103 = scmp.eq.s32.totalorder %s23, 1
      %p104 = por %p102, %p103
      %p106 = scmp.ne.s32.totalorder %s91, %s105
      %p107 = scmp.eq.s32.totalorder %s23, 0
      %p108 = por %p106, %p107
      %s110 = sadd.s32 %s109, 1
      %p113 = scmp.eq.s32.totalorder %s17, 1
      %p114 = scmp.ne.s32.totalorder %s109, %s111
      %p115 = scmp.eq.s32.totalorder %s17, 0
      %p116 = por %p114, %p115
      %p117 = scmp.ne.s32.totalorder %s109, %s111
      %p118 = scmp.eq.s32.totalorder %s22, 1
      %p119 = por %p117, %p118
      %p120 = scmp.ne.s32.totalorder %s111, %s112
      %p121 = scmp.eq.s32.totalorder %s22, 0
      %p122 = por %p120, %p121
      %p123 = scmp.ne.s32.totalorder %s111, %s112
      %p124 = scmp.eq.s32.totalorder %s23, 1
      %p125 = por %p123, %p124
      %p127 = scmp.ne.s32.totalorder %s112, %s126
      %p128 = scmp.eq.s32.totalorder %s23, 0
      %p129 = por %p127, %p128
      %s130 = ssub.s32 %s17, %s24
      %p131 = scmp.eq.s32.totalorder %s130, 0
      %s133 = sadd.s32 %s132, 1
      %s134 = scalar_select %p131, %s132, %s133
      %p137 = pneg %p131
      %p138 = scmp.eq.s32.totalorder %s17, 1
      %p139 = por %p137, %p138
      %p140 = scmp.ne.s32.totalorder %s132, %s135
      %p141 = scmp.eq.s32.totalorder %s17, 0
      %p142 = por %p140, %p141
      %p143 = scmp.ne.s32.totalorder %s132, %s135
      %p144 = scmp.eq.s32.totalorder %s22, 1
      %p145 = por %p143, %p144
      %p146 = scmp.ne.s32.totalorder %s135, %s136
      %p147 = scmp.eq.s32.totalorder %s22, 0
      %p148 = por %p146, %p147
      %p149 = scmp.ne.s32.totalorder %s135, %s136
      %p150 = scmp.eq.s32.totalorder %s23, 1
      %p151 = por %p149, %p150
      %p153 = scmp.ne.s32.totalorder %s136, %s152
      %p154 = scmp.eq.s32.totalorder %s23, 0
      %p155 = por %p153, %p154
      %s156 = ssub.s32 %s17, %s24
      %p157 = scmp.eq.s32.totalorder %s156, 0
      %s159 = sadd.s32 %s158, 1
      %s160 = scalar_select %p157, %s158, %s159
      %p163 = pneg %p157
      %p164 = scmp.eq.s32.totalorder %s17, 1
      %p165 = por %p163, %p164
      %p166 = scmp.ne.s32.totalorder %s158, %s161
      %p167 = scmp.eq.s32.totalorder %s17, 0
      %p168 = por %p166, %p167
      %p169 = scmp.ne.s32.totalorder %s158, %s161
      %p170 = scmp.eq.s32.totalorder %s22, 1
      %p171 = por %p169, %p170
      %p172 = scmp.ne.s32.totalorder %s161, %s162
      %p173 = scmp.eq.s32.totalorder %s22, 0
      %p174 = por %p172, %p173
      %p175 = scmp.ne.s32.totalorder %s161, %s162
      %p176 = scmp.eq.s32.totalorder %s23, 1
      %p177 = por %p175, %p176
      %p179 = scmp.ne.s32.totalorder %s162, %s178
      %p180 = scmp.eq.s32.totalorder %s23, 0
      %p181 = por %p179, %p180
      %s182 = ssub.s32 %s17, %s24
      %p183 = scmp.eq.s32.totalorder %s182, 0
      %s185 = sadd.s32 %s184, 1
      %s186 = scalar_select %p183, %s184, %s185
      %p189 = pneg %p183
      %p190 = scmp.eq.s32.totalorder %s17, 1
      %p191 = por %p189, %p190
      %p192 = scmp.ne.s32.totalorder %s184, %s187
      %p193 = scmp.eq.s32.totalorder %s17, 0
      %p194 = por %p192, %p193
      %p195 = scmp.ne.s32.totalorder %s184, %s187
      %p196 = scmp.eq.s32.totalorder %s22, 1
      %p197 = por %p195, %p196
      %p198 = scmp.ne.s32.totalorder %s187, %s188
      %p199 = scmp.eq.s32.totalorder %s22, 0
      %p200 = por %p198, %p199
      %p201 = scmp.ne.s32.totalorder %s187, %s188
      %p202 = scmp.eq.s32.totalorder %s23, 1
      %p203 = por %p201, %p202
      %p205 = scmp.ne.s32.totalorder %s188, %s204
      %p206 = scmp.eq.s32.totalorder %s23, 0
      %p207 = por %p205, %p206
      %p208 = scmp.le.s32.totalorder 1, %s17
      %p209 = scmp.lt.s32.totalorder %s17, 3
      %p210 = pnand %p208, %p209
      %p211 = pneg %p210
      // Predicated region
      $region9: #{time_encoding_forward.1} parent=5 // pred_check
        _
      $region10: #{time_encoding_forward.1} parent=5 // pred_check_branch
        %213 = sbr.rel (%p210) target = $region12
      $region11: #{time_encoding_forward.1} parent=5 // pred_region
        %s214 = ssub.s32 %s17, 1
        // Predicated region
        $region13: #{time_encoding_forward.1} parent=11 // pred_check
          %p215 = pneg %p38
        $region14: #{time_encoding_forward.1} parent=11 // pred_check_branch
          %217 = sbr.rel (%p215) target = $region16
        $region15: #{time_encoding_forward.1} parent=11 // pred_region
          _
        $region16: #{time_encoding_forward.1} parent=11 // pred_fallthru
          _
        // Predicated region
        $region17: #{time_encoding_forward.1} parent=11 // pred_check
          %p218 = pneg %p59
        $region18: #{time_encoding_forward.1} parent=11 // pred_check_branch
          %220 = sbr.rel (%p218) target = $region20
        $region19: #{time_encoding_forward.1} parent=11 // pred_region
          _
        $region20: #{time_encoding_forward.1} parent=11 // pred_fallthru
          _
        // Predicated region
        $region21: #{time_encoding_forward.1} parent=11 // pred_check
          %p221 = pneg %p80
        $region22: #{time_encoding_forward.1} parent=11 // pred_check_branch
          %223 = sbr.rel (%p221) target = $region24
        $region23: #{time_encoding_forward.1} parent=11 // pred_region
          _
        $region24: #{time_encoding_forward.1} parent=11 // pred_fallthru
          _
        // Predicated region
        $region25: #{time_encoding_forward.1} parent=11 // pred_check
          %p224 = pneg %p101
        $region26: #{time_encoding_forward.1} parent=11 // pred_check_branch
          %226 = sbr.rel (%p224) target = $region28
        $region27: #{time_encoding_forward.1} parent=11 // pred_region
          %s228 = ssub.s32 1024, 1024
          %229 = vsyncadd [#allocation3], %s228
          %s230 = sshll.u32 [#allocation2], 4
          %s231 = int_to_ptr.vmem [resolvable:$true] %s230
          %236 = dma.hbm_to_vmem [thread:$0]  %s3, 1024, %s231, [#allocation3], 128, 128, 8
        $region28: #{time_encoding_forward.1} parent=11 // pred_fallthru
          _
        // Predicated region
        $region29: #{time_encoding_forward.1} parent=11 // pred_check
          %p237 = pneg %p122
        $region30: #{time_encoding_forward.1} parent=11 // pred_check_branch
          %239 = sbr.rel (%p237) target = $region32
        $region31: #{time_encoding_forward.1} parent=11 // pred_region
          _
        $region32: #{time_encoding_forward.1} parent=11 // pred_fallthru
          _
      $region12: #{time_encoding_forward.1} parent=5 // pred_fallthru
        _
      %p240 = scmp.lt.s32.totalorder %s17, 2
      // Predicated region
      $region33: #{time_encoding_forward.1} parent=5 // pred_check
        %p241 = pneg %p240
      $region34: #{time_encoding_forward.1} parent=5 // pred_check_branch
        %243 = sbr.rel (%p241) target = $region36
      $region35: #{time_encoding_forward.1} parent=5 // pred_region
        // Predicated region
        $region37: #{time_encoding_forward.1} parent=35 // pred_check
          %p244 = pneg %p142
        $region38: #{time_encoding_forward.1} parent=35 // pred_check_branch
          %246 = sbr.rel (%p244) target = $region40
        $region39: #{time_encoding_forward.1} parent=35 // pred_region
          %s247 = sand.u32 %s132, 1
          %s248 = scalar_lea.sflag [#allocation5], %s247
          %s249 = sand.u32 %s132, 1
          %s250 = smul.addr %s249, 128
          %s251 = scalar_lea.vmem [#allocation4], %s250
          %s253 = ssub.s32 2048, 2048
          %254 = vsyncadd %s248, %s253
          %s255 = smul.addr %s17, 64
          %s256 = scalar_lea.hbm %s5, %s255
          %s257 = sshll.u32 %s251, 4
          %s258 = int_to_ptr.vmem [resolvable:$true] %s257
          %263 = dma.hbm_to_vmem [thread:$0]  %s256, 2048, %s258, %s248, 128, 64, 4
        $region40: #{time_encoding_forward.1} parent=35 // pred_fallthru
          _
        // Predicated region
        $region41: #{time_encoding_forward.1} parent=35 // pred_check
          %p264 = pneg %p168
        $region42: #{time_encoding_forward.1} parent=35 // pred_check_branch
          %266 = sbr.rel (%p264) target = $region44
        $region43: #{time_encoding_forward.1} parent=35 // pred_region
          %p267 = scmp.lt.s32.totalorder %s17, 1
          %s268 = scalar_select %p267, %s17, 1
          %s269 = scalar_lea.vmem %s6, %s268
        $region44: #{time_encoding_forward.1} parent=35 // pred_fallthru
          _
      $region36: #{time_encoding_forward.1} parent=5 // pred_fallthru
        _
      %p270 = scmp.le.s32.totalorder 1, %s17
      %p271 = scmp.lt.s32.totalorder %s17, 3
      %p272 = pnand %p270, %p271
      %p273 = pneg %p272
      // Predicated region
      $region45: #{time_encoding_forward.1} parent=5 // pred_check
        _
      $region46: #{time_encoding_forward.1} parent=5 // pred_check_branch
        %275 = sbr.rel (%p272) target = $region48
      $region47: #{time_encoding_forward.1} parent=5 // pred_region
        %s276 = ssub.s32 %s17, 1
        // Predicated region
        $region49: #{time_encoding_forward.1} parent=47 // pred_check
          %p277 = pneg %p101
        $region50: #{time_encoding_forward.1} parent=47 // pred_check_branch
          %279 = sbr.rel (%p277) target = $region52
        $region51: #{time_encoding_forward.1} parent=47 // pred_region
          %280 = dma.done [#allocation3], 1024
        $region52: #{time_encoding_forward.1} parent=47 // pred_fallthru
          _
        %s281 = sand.u32 %s135, 1
        %s282 = scalar_lea.sflag [#allocation5], %s281
        %s283 = sand.u32 %s135, 1
        %s284 = smul.addr %s283, 128
        %s285 = scalar_lea.vmem [#allocation4], %s284
        // Predicated region
        $region53: #{time_encoding_forward.1} parent=47 // pred_check
          %p286 = pneg %p148
        $region54: #{time_encoding_forward.1} parent=47 // pred_check_branch
          %288 = sbr.rel (%p286) target = $region56
        $region55: #{time_encoding_forward.1} parent=47 // pred_region
          %289 = dma.done %s282, 2048
        $region56: #{time_encoding_forward.1} parent=47 // pred_fallthru
          _
        %p290 = pneg %p38
        %p291 = pneg %p35
        %p292 = pneg %p59
        %p293 = pneg %p56
        %p294 = pneg %p80
        %p295 = pneg %p77
        %p296 = pneg %p101
        %p297 = pneg %p98
        %p298 = pneg %p122
        %p299 = pneg %p119
        %s300 = sand.u32 %s135, 1
        %s301 = scalar_lea.sflag [#allocation5], %s300
        %s302 = sand.u32 %s135, 1
        %s303 = smul.addr %s302, 128
        %s304 = scalar_lea.vmem [#allocation4], %s303
        %p305 = pneg %p148
        %p306 = pneg %p145
        %p307 = scmp.lt.s32.totalorder %s22, 1
        %s308 = scalar_select %p307, %s22, 1
        %s309 = scalar_lea.vmem %s6, %s308
        %p310 = pneg %p174
        %p311 = pneg %p171
        %p312 = pneg %p200
        %p313 = pneg %p197
        %p314 = scmp.lt.s32.totalorder %s22, 1
        %s315 = scalar_select %p314, %s22, 1
        %s316 = smul.addr %s315, 8
        %s317 = scalar_lea.vmem %s7, %s316
        %p318 = scmp.lt.s32.totalorder %s22, 1
        %s319 = scalar_select %p318, %s22, 1
        %s320 = scalar_lea.vmem %s6, %s319
        %p321 = scmp.lt.s32.totalorder %s22, 1
        %s322 = scalar_select %p321, %s22, 1
        %s323 = smul.addr %s322, 8
        %s324 = scalar_lea.vmem %s7, %s323
        %v326 = vld [vmem:[%s0] sm:$0xff]
        %v327 = vld [vmem:[%s1] sm:$0x1]
        %329 = vset.pattern.permute.xlu0 0
        %330 = vperm.xlu0 %329, %v326
        %v331 = vpop.permute.xlu0 %330
        %v334 = vlaneseq
        %v335 = vshrl.u32 %v334, 7
        %v336 = vsub.s32 0, %v335
        %v337 = vrot.slane %v327, %v336
        %v339 = vmul.f32 %v331, %v337
        %v340 = vld [vmem:[%s2] sm:$0x1]
        %v342 = vlaneseq
        %v343 = vshrl.u32 %v342, 7
        %v344 = vsub.s32 0, %v343
        %v345 = vrot.slane %v340, %v344
        %v347 = vadd.f32 %v339, %v345
        %v348 = vand.u32 2147483647, %v347
        %vm349 = vcmp.le.f32.partialorder %v348, 0.7853982
        %vm350 = vcmp.lt.s32.totalorder %v347, 0
        %v351 = vand.u32 %v347, 2139095040
        %v352 = vshrl.u32 %v351, 23
        %v353 = vsub.s32 %v352, 127
        %v354 = vand.u32 2147483647, %v347
        %v355 = vand.u32 %v354, 8388607
        %v356 = vor.u32 %v355, 8388608
        %v357 = vsub.s32 0, %v356
        %v358 = vadd.s32 %v353, 1
        %vm359 = vcmp.gt.s32.totalorder %v358, 0
        %v360 = vsel %vm359, %v358, 0
        %v361 = vshrl.u32 %v360, 5
        %v362 = vand.u32 %v360, 31
        %v363 = vsub.s32 32, %v362
        %v364 = vshrl.u32 683565275, %v363
        %v365 = vshll.u32 683565275, %v362
        %v366 = vshrl.u32 2475754826, %v363
        %v367 = vor.u32 %v365, %v366
        %v368 = vshll.u32 2475754826, %v362
        %v369 = vshrl.u32 2131351028, %v363
        %v370 = vor.u32 %v368, %v369
        %v371 = vshll.u32 2131351028, %v362
        %v372 = vshrl.u32 2102212464, %v363
        %v373 = vor.u32 %v371, %v372
        %v374 = vshll.u32 2102212464, %v362
        %v375 = vshrl.u32 920167782, %v363
        %v376 = vor.u32 %v374, %v375
        %v377 = vshll.u32 920167782, %v362
        %v378 = vshrl.u32 1326507024, %v363
        %v379 = vor.u32 %v377, %v378
        %vm380 = vcmp.lt.s32.totalorder %v361, 1
        %vm381 = vcmp.lt.s32.totalorder %v361, 2
        %vm382 = vcmp.lt.s32.totalorder %v361, 3
        %vm383 = vcmp.lt.s32.totalorder %v361, 4
        %v384 = vsel %vm380, %v364, %v367
        %v385 = vsel %vm383, %v373, 2102212464
        %v386 = vsel %vm382, %v370, %v385
        %v387 = vsel %vm381, %v384, %v386
        %v388 = vsel %vm380, %v367, %v370
        %v389 = vsel %vm383, %v376, 920167782
        %v390 = vsel %vm382, %v373, %v389
        %v391 = vsel %vm381, %v388, %v390
        %v392 = vsel %vm380, %v370, %v373
        %v393 = vsel %vm383, %v379, 1326507024
        %v394 = vsel %vm382, %v376, %v393
        %v395 = vsel %vm381, %v392, %v394
        %v396 = vshll.u32 %v356, 8
        %v397 = vmul.u32.u64.compose %v396, %v395
        %v398 = vextract.low.u32 %v397
        %v399 = vextract.high.u32 %v397
        %v400 = vmul.u32.u64.compose %v396, %v391
        %v401 = vextract.low.u32 %v400
        %v402 = vextract.high.u32 %v400
        %v403 = vmul.u32 %v396, %v387
        %v404 = vadd.s32 %v399, %v401
        %vm405 = vc.u32 %v399, %v401
        %v406 = vadd.s32 %v402, 1
        %v407 = vsel %vm405, %v406, %v402
        %v408 = vadd.s32 %v403, %v407
        %v409 = vadd.s32 %v408, 536870912
        %v410 = vshrl.u32 %v409, 30
        %v411 = vshll.u32 %v410, 30
        %v412 = vsub.s32 %v408, %v411
        %vm413 = vcmp.lt.s32.totalorder %v412, 0
        %v414 = vsub.s32 0, %v412
        %v415 = vsel %vm413, %v414, %v412
        %v416 = vclz %v415
        %v417 = vsub.s32 %v416, 2
        %vm418 = vcmp.gt.s32.totalorder 0, %v417
        %v419 = vsel %vm418, 0, %v417
        %v420 = vsub.s32 32, %v419
        %v421 = vshll.u32 %v412, %v419
        %v422 = vshrl.u32 %v404, %v420
        %v423 = vor.u32 %v421, %v422
        %v424 = vsub.s32 4294967266, %v419
        %v425 = vadd.s32 %v424, 127
        %v426 = vshll.u32 %v425, 23
        %v427 = vor.u32 4788187, %v426
        %v428 = vand.u32 2147483647, %v427
        %v430 = vcvt.s32.f32 %v423
        %v431 = vmul.f32 %v430, %v428
        %v432 = vxor.u32 %v431, 2147483648
        %v433 = vsel %vm350, %v432, %v431
        %v434 = vsub.s32 4, %v410
        %v435 = vsel %vm350, %v434, %v410
        %v436 = vsel %vm349, %v347, %v433
        %v437 = vsel %vm349, 0, %v435
        %v438 = vcosq.f32.pop %v436
        %v439 = vsinq.f32.pop %v436
        %vm440 = vweird.f32 %v347
        %v441 = vadd.s32 %v437, 3
        %v442 = vand.u32 %v441, 3
        %vm443 = vcmp.lt.s32.totalorder %v442, 2
        %vm444 = vcmp.eq.s32.totalorder %v442, 0
        %v445 = vxor.u32 %v439, 2147483648
        %v446 = vsel %vm444, %v438, %v445
        %vm447 = vcmp.eq.s32.totalorder %v442, 2
        %v448 = vxor.u32 %v438, 2147483648
        %v449 = vsel %vm447, %v448, %v439
        %v450 = vsel %vm443, %v446, %v449
        %v451 = vsel %vm440, nan, %v450
        %v452 = vpack.c.bf16 %v451, %v451
        %v453 = vld [vmem:[#allocation2] sm:$0xff]
        %v454 = vld [vmem:[#allocation2 + $0x8] sm:$0xff]
        %v455 = vld [vmem:[#allocation2 + $0x10] sm:$0xff]
        %v456 = vld [vmem:[#allocation2 + $0x18] sm:$0xff]
        %v457 = vld [vmem:[#allocation2 + $0x20] sm:$0xff]
        %v458 = vld [vmem:[#allocation2 + $0x28] sm:$0xff]
        %v459 = vld [vmem:[#allocation2 + $0x30] sm:$0xff]
        %v460 = vld [vmem:[#allocation2 + $0x38] sm:$0xff]
        %v461 = vld [vmem:[%s4] sm:$0x3]
        %v463 = vlaneseq
        %v464 = vshrl.u32 %v463, 7
        %v465 = vsub.s32 0, %v464
        %v466 = vrot.slane %v461, %v465
        %v467 = vlaneseq
        %v468 = vshrl.u32 %v467, 7
        %v469 = vsub.s32 1, %v468
        %v470 = vrot.slane %v461, %v469
        %v481 = vunpack.c.l.b16 %v453
        %v482 = vunpack.c.h.b16 %v453
        %v483 = vunpack.c.l.b16 %v454
        %v484 = vunpack.c.h.b16 %v454
        %v485 = vunpack.c.l.b16 %v455
        %v486 = vunpack.c.h.b16 %v455
        %v487 = vunpack.c.l.b16 %v456
        %v488 = vunpack.c.h.b16 %v456
        %v489 = vunpack.c.l.b16 %v457
        %v490 = vunpack.c.h.b16 %v457
        %v491 = vunpack.c.l.b16 %v458
        %v492 = vunpack.c.h.b16 %v458
        %v493 = vunpack.c.l.b16 %v459
        %v494 = vunpack.c.h.b16 %v459
        %v495 = vunpack.c.l.b16 %v460
        %v496 = vunpack.c.h.b16 %v460
        %v497 = vpack.c.b16 %v483, %v481
        %v498 = vpack.c.b16 %v484, %v482
        %v499 = vpack.c.b16 %v487, %v485
        %v500 = vpack.c.b16 %v488, %v486
        %v501 = vpack.c.b16 %v491, %v489
        %v502 = vpack.c.b16 %v492, %v490
        %v503 = vpack.c.b16 %v495, %v493
        %v504 = vpack.c.b16 %v496, %v494
        %vm513 = vcmask 523264
        %v515 = vsel %vm513, %v452, 0
        %517 = vmatprep.subr.bf16.mxu0 0
        %518 = vmatpush1.bf16.msra.mxu0 0
        %519 = vmatprep.subr.bf16.mxu0 0
        %520 = vmatpush1.bf16.msra.mxu0 0
        %521 = vmatprep.subr.bf16.mxu0 0
        %522 = vmatpush1.bf16.msra.mxu0 0
        %523 = vmatprep.subr.bf16.mxu0 0
        %524 = vmatpush1.bf16.msra.mxu0 0
        %525 = vmatprep.subr.bf16.mxu0 %v504
        %526 = vmatpush1.bf16.msra.mxu0 %v503
        %527 = vmatprep.subr.bf16.mxu0 %v502
        %528 = vmatpush1.bf16.msra.mxu0 %v501
        %529 = vmatprep.subr.bf16.mxu0 %v500
        %530 = vmatpush1.bf16.msra.mxu0 %v499
        %531 = vmatprep.subr.bf16.mxu0 %v498
        %532 = vmatpush1.bf16.msra.mxu0 %v497
        %533 = vmatprep.subr.bf16.mxu0 0
        %534 = vmatpush2.bf16.msra.mxu0 0
        %535 = vmatprep.subr.bf16.mxu0 0
        %536 = vmatpush2.bf16.msra.mxu0 0
        %537 = vmatprep.subr.bf16.mxu0 0
        %538 = vmatpush2.bf16.msra.mxu0 0
        %539 = vmatprep.subr.bf16.mxu0 0
        %540 = vmatpush2.bf16.msra.mxu0 0
        %541 = vmatprep.subr.bf16.mxu0 0
        %542 = vmatpush2.bf16.msra.mxu0 0
        %543 = vmatprep.subr.bf16.mxu0 0
        %544 = vmatpush2.bf16.msra.mxu0 0
        %545 = vmatprep.subr.bf16.mxu0 0
        %546 = vmatpush2.bf16.msra.mxu0 0
        %547 = vmatprep.subr.bf16.mxu0 0
        %548 = vmatpush2.bf16.msra.mxu0 0
        %549 = vmatprep.mubr.bf16.mxu0 0
        %550 = vmatmul.mubr.bf16.gmra.mxu0 %v515
        %v551 = vpop.f32.mrf.mxu0
        %v552 = vadd.f32 %v466, %v551
        %v553 = vpop.f32.mrf.mxu0
        %v554 = vadd.f32 %v470, %v553
        %v555 = vpop.f32.mrf.mxu0
        %v556 = vpop.f32.mrf.mxu0
        %557 = vdwg.mxu0
        %v558 = vxor.u32 %v552, 2147483648
        %v559 = vxor.u32 %v554, 2147483648
        %v560 = vmul.f32 %v558, 1.442695
        %v561 = vpow.pop %v560
        %v562 = vmul.f32 %v559, 1.442695
        %v563 = vpow.pop %v562
        %v564 = vadd.f32 %v561, 1.0
        %v565 = vadd.f32 %v563, 1.0
        %v566 = vrcp.pop %v564
        %v567 = vmul.f32 1.0, %v566
        %v568 = vrcp.pop %v565
        %v569 = vmul.f32 1.0, %v568
        %v570 = vmul.f32 %v552, %v567
        %v571 = vmul.f32 %v554, %v569
        %v572 = vpack.c.bf16 %v570, %v570
        %v573 = vpack.c.bf16 %v571, %v571
        %v574 = vld [vmem:[%s285] sm:$0xf]
        %v575 = vld [vmem:[%s285 + $0x4] sm:$0xf]
        %v576 = vld [vmem:[%s285 + $0x8] sm:$0xf]
        %v577 = vld [vmem:[%s285 + $0xc] sm:$0xf]
        %v578 = vld [vmem:[%s285 + $0x10] sm:$0xf]
        %v579 = vld [vmem:[%s285 + $0x14] sm:$0xf]
        %v580 = vld [vmem:[%s285 + $0x18] sm:$0xf]
        %v581 = vld [vmem:[%s285 + $0x1c] sm:$0xf]
        %v582 = vld [vmem:[%s285 + $0x20] sm:$0xf]
        %v583 = vld [vmem:[%s285 + $0x24] sm:$0xf]
        %v584 = vld [vmem:[%s285 + $0x28] sm:$0xf]
        %v585 = vld [vmem:[%s285 + $0x2c] sm:$0xf]
        %v586 = vld [vmem:[%s285 + $0x30] sm:$0xf]
        %v587 = vld [vmem:[%s285 + $0x34] sm:$0xf]
        %v588 = vld [vmem:[%s285 + $0x38] sm:$0xf]
        %v589 = vld [vmem:[%s285 + $0x3c] sm:$0xf]
        %v590 = vld [vmem:[%s285 + $0x40] sm:$0xf]
        %v591 = vld [vmem:[%s285 + $0x44] sm:$0xf]
        %v592 = vld [vmem:[%s285 + $0x48] sm:$0xf]
        %v593 = vld [vmem:[%s285 + $0x4c] sm:$0xf]
        %v594 = vld [vmem:[%s285 + $0x50] sm:$0xf]
        %v595 = vld [vmem:[%s285 + $0x54] sm:$0xf]
        %v596 = vld [vmem:[%s285 + $0x58] sm:$0xf]
        %v597 = vld [vmem:[%s285 + $0x5c] sm:$0xf]
        %v598 = vld [vmem:[%s285 + $0x60] sm:$0xf]
        %v599 = vld [vmem:[%s285 + $0x64] sm:$0xf]
        %v600 = vld [vmem:[%s285 + $0x68] sm:$0xf]
        %v601 = vld [vmem:[%s285 + $0x6c] sm:$0xf]
        %v602 = vld [vmem:[%s285 + $0x70] sm:$0xf]
        %v603 = vld [vmem:[%s285 + $0x74] sm:$0xf]
        %v604 = vld [vmem:[%s285 + $0x78] sm:$0xf]
        %v605 = vld [vmem:[%s285 + $0x7c] sm:$0xf]
        %v606 = vld [vmem:[%s320] sm:$0x1]
        %v608 = vlaneseq
        %v609 = vshrl.u32 %v608, 7
        %v610 = vsub.s32 0, %v609
        %v611 = vrot.slane %v606, %v610
        %v645 = vunpack.c.l.b16 %v574
        %v646 = vunpack.c.l.b16 %v575
        %v647 = vunpack.c.l.b16 %v576
        %v648 = vunpack.c.l.b16 %v577
        %v649 = vunpack.c.l.b16 %v578
        %v650 = vunpack.c.l.b16 %v579
        %v651 = vunpack.c.l.b16 %v580
        %v652 = vunpack.c.l.b16 %v581
        %v653 = vunpack.c.l.b16 %v582
        %v654 = vunpack.c.l.b16 %v583
        %v655 = vunpack.c.l.b16 %v584
        %v656 = vunpack.c.l.b16 %v585
        %v657 = vunpack.c.l.b16 %v586
        %v658 = vunpack.c.l.b16 %v587
        %v659 = vunpack.c.l.b16 %v588
        %v660 = vunpack.c.l.b16 %v589
        %v661 = vunpack.c.l.b16 %v590
        %v662 = vunpack.c.l.b16 %v591
        %v663 = vunpack.c.l.b16 %v592
        %v664 = vunpack.c.l.b16 %v593
        %v665 = vunpack.c.l.b16 %v594
        %v666 = vunpack.c.l.b16 %v595
        %v667 = vunpack.c.l.b16 %v596
        %v668 = vunpack.c.l.b16 %v597
        %v669 = vunpack.c.l.b16 %v598
        %v670 = vunpack.c.l.b16 %v599
        %v671 = vunpack.c.l.b16 %v600
        %v672 = vunpack.c.l.b16 %v601
        %v673 = vunpack.c.l.b16 %v602
        %v674 = vunpack.c.l.b16 %v603
        %v675 = vunpack.c.l.b16 %v604
        %v676 = vunpack.c.l.b16 %v605
        %v677 = vpack.c.b16 %v646, %v645
        %v678 = vpack.c.b16 %v648, %v647
        %v679 = vpack.c.b16 %v650, %v649
        %v680 = vpack.c.b16 %v652, %v651
        %v681 = vpack.c.b16 %v654, %v653
        %v682 = vpack.c.b16 %v656, %v655
        %v683 = vpack.c.b16 %v658, %v657
        %v684 = vpack.c.b16 %v660, %v659
        %v685 = vpack.c.b16 %v662, %v661
        %v686 = vpack.c.b16 %v664, %v663
        %v687 = vpack.c.b16 %v666, %v665
        %v688 = vpack.c.b16 %v668, %v667
        %v689 = vpack.c.b16 %v670, %v669
        %v690 = vpack.c.b16 %v672, %v671
        %v691 = vpack.c.b16 %v674, %v673
        %v692 = vpack.c.b16 %v676, %v675
        %709 = vmatprep.subr.bf16.mxu0 0
        %710 = vmatpush1.bf16.msra.mxu0 %v684
        %711 = vmatprep.subr.bf16.mxu0 0
        %712 = vmatpush1.bf16.msra.mxu0 %v683
        %713 = vmatprep.subr.bf16.mxu0 0
        %714 = vmatpush1.bf16.msra.mxu0 %v682
        %715 = vmatprep.subr.bf16.mxu0 0
        %716 = vmatpush1.bf16.msra.mxu0 %v681
        %717 = vmatprep.subr.bf16.mxu0 0
        %718 = vmatpush1.bf16.msra.mxu0 %v680
        %719 = vmatprep.subr.bf16.mxu0 0
        %720 = vmatpush1.bf16.msra.mxu0 %v679
        %721 = vmatprep.subr.bf16.mxu0 0
        %722 = vmatpush1.bf16.msra.mxu0 %v678
        %723 = vmatprep.subr.bf16.mxu0 0
        %724 = vmatpush1.bf16.msra.mxu0 %v677
        %725 = vmatprep.subr.bf16.mxu0 0
        %726 = vmatpush2.bf16.msra.mxu0 %v692
        %727 = vmatprep.subr.bf16.mxu0 0
        %728 = vmatpush2.bf16.msra.mxu0 %v691
        %729 = vmatprep.subr.bf16.mxu0 0
        %730 = vmatpush2.bf16.msra.mxu0 %v690
        %731 = vmatprep.subr.bf16.mxu0 0
        %732 = vmatpush2.bf16.msra.mxu0 %v689
        %733 = vmatprep.subr.bf16.mxu0 0
        %734 = vmatpush2.bf16.msra.mxu0 %v688
        %735 = vmatprep.subr.bf16.mxu0 0
        %736 = vmatpush2.bf16.msra.mxu0 %v687
        %737 = vmatprep.subr.bf16.mxu0 0
        %738 = vmatpush2.bf16.msra.mxu0 %v686
        %739 = vmatprep.subr.bf16.mxu0 0
        %740 = vmatpush2.bf16.msra.mxu0 %v685
        %741 = vmatprep.mubr.bf16.mxu0 %v573
        %742 = vmatmul.mubr.bf16.gmra.mxu0 %v572
        %v743 = vpop.f32.mrf.mxu0
        %v744 = vadd.f32 %v611, %v743
        %v745 = vpop.f32.mrf.mxu0
        %v746 = vpop.f32.mrf.mxu0
        %v747 = vpop.f32.mrf.mxu0
        %748 = vdwg.mxu0
        %749 = vst [vmem:[%s324] sm:$0xff] %v744
        %p750 = scmp.lt.s32.totalorder %s22, 1
        %s751 = scalar_select %p750, %s22, 1
        %s752 = smul.addr %s751, 8
        %s753 = scalar_lea.vmem %s7, %s752
        // Predicated region
        $region57: #{time_encoding_forward.1} parent=47 // pred_check
          %p754 = pneg %p197
        $region58: #{time_encoding_forward.1} parent=47 // pred_check_branch
          %756 = sbr.rel (%p754) target = $region60
        $region59: #{time_encoding_forward.1} parent=47 // pred_region
          _
        $region60: #{time_encoding_forward.1} parent=47 // pred_fallthru
          _
      $region48: #{time_encoding_forward.1} parent=5 // pred_fallthru
        _
      %p757 = scmp.le.s32.totalorder 2, %s17
      // Predicated region
      $region61: #{time_encoding_forward.1} parent=5 // pred_check
        %p758 = pneg %p757
      $region62: #{time_encoding_forward.1} parent=5 // pred_check_branch
        %760 = sbr.rel (%p758) target = $region64
      $region63: #{time_encoding_forward.1} parent=5 // pred_region
        %s761 = ssub.s32 %s17, 2
        // Predicated region
        $region65: #{time_encoding_forward.1} parent=63 // pred_check
          %p762 = pneg %p203
        $region66: #{time_encoding_forward.1} parent=63 // pred_check_branch
          %764 = sbr.rel (%p762) target = $region68
        $region67: #{time_encoding_forward.1} parent=63 // pred_region
          %p765 = scmp.lt.s32.totalorder %s23, 1
          %s766 = scalar_select %p765, %s23, 1
          %s767 = smul.addr %s766, 8
          %s768 = scalar_lea.vmem %s7, %s767
        $region68: #{time_encoding_forward.1} parent=63 // pred_fallthru
          _
      $region64: #{time_encoding_forward.1} parent=5 // pred_fallthru
        _
    $region6: #{time_encoding_forward.1} parent=1 // loop_footer
      %s21 = sadd.s32 1, %s17
    $region7: #{time_encoding_forward.1} parent=1 // loop_footer_branch
      %16 = sbr.rel target = $region3
    $region8: #{time_encoding_forward.1} parent=1 // loop_exit
      _
    %769 = vsyncpa [#allocation3], 1
    %s770 = scalar_lea.sflag [#allocation3], 1
    %771 = vsyncpa %s770, 1
    %772 = vsyncpa [#allocation5], 1
    %s773 = scalar_lea.sflag [#allocation5], 1
    %774 = vsyncpa %s773, 1

</llo_original>
